<compile_context>
chip_gen: v5e
topology: v5e:2x2
jax: 0.10.0
libtpu: 0.0.40
codegen_flags: <defaults>
</compile_context>

<pallas_src>
import math
import jax
import jax.numpy as jnp
from jax import lax
from jax.experimental import pallas as pl
from jax.experimental.pallas import tpu as pltpu


# ------------------------------ Pallas kernels ------------------------------

def _score_kernel(zt_ref, scorer_ref, mask_ref, out_ref):
    """scores_t = Z_t @ scorer_hat + mask_t   (one timestep per grid point).

    zt_ref     : (1, F, N)  Z_t^T (f32)  -- N on the lane axis
    scorer_ref : (F, 1)     pre-normalized scorer (norm hoisted to glue)
    mask_ref   : (1, 1, N)
    out_ref    : (1, 1, N)  lane-dense scores
    """
    zt = zt_ref[0]                                              # (F, N)
    # VPU multiply + sublane (XLU) reduce over F; avoids a 1-column MXU pass.
    s = jnp.sum(zt * scorer_ref[...], axis=0, keepdims=True)    # (1, N)
    out_ref[0] = s + mask_ref[0]


def _ax_kernel(xt_ref, a_ref, out_ref):
    """Row-block of (Ahat_t @ X_t)^T with bf16 MXU inputs, f32 accumulation.

    xt_ref : (1, F, N)    X_t^T (bf16)
    a_ref  : (1, bm, N)   row block of Ahat_t (bf16)
    out    : (1, F, bm)   == (Ahat_t @ X_t)^T[:, m0:m0+bm]   (f32, lane-dense)
    """
    out_ref[0] = lax.dot_general(
        xt_ref[0], a_ref[0],
        dimension_numbers=(((1,), (1,)), ((), ())),      # X^T @ A^T (rhs-transposed)
        preferred_element_type=jnp.float32)


def _gru_gcn_kernel(ztop_ref, stop_ref, axt_ref, q0_ref,
                    w_all_ref, u_ur_ref, u_h_ref, b_all_ref,
                    out_ref, q_scr):
    """One sequential timestep: mat-GRU weight evolution + GCN application.

    The evolving weight Q lives in VMEM scratch `q_scr` for the whole grid=(T,)
    loop; parameter blocks have constant indices so they are not re-fetched
    between steps.
    """
    rows, cols = q_scr.shape

    @pl.when(pl.program_id(0) == 0)
    def _():
        q_scr[...] = q0_ref[...]

    q = q_scr[...]                                              # (rows, cols)
    # z_topk = (Z[topk] * tanh(scores[topk])).T
    z = ztop_ref[0] * jnp.tanh(stop_ref[0])                     # (rows, cols)

    # [Wu; Wr; Wh] @ z + [bu; br; bh]  -> one MXU matmul for all three gates.
    wz = jnp.dot(w_all_ref[...], z,
                 preferred_element_type=jnp.float32) + b_all_ref[...]    # (3r, c)
    # [Uu; Ur] @ q -> one matmul for the update/reset hidden-state terms.
    uq = jnp.dot(u_ur_ref[...], q, preferred_element_type=jnp.float32)   # (2r, c)

    update = jax.nn.sigmoid(wz[:rows] + uq[:rows])
    reset = jax.nn.sigmoid(wz[rows:2 * rows] + uq[rows:2 * rows])
    h_cap = jnp.tanh(wz[2 * rows:]
                     + jnp.dot(u_h_ref[...], reset * q,
                               preferred_element_type=jnp.float32))
    new_q = (1.0 - update) * q + update * h_cap
    q_scr[...] = new_q

    # GCN step, lane-dense store: out_t^T = relu(W_t^T @ (Ahat_t @ X_t)^T).
    # TODO(synk): args.activation is configurable (RReLU in EvolveGCN); a fixed
    # deterministic ReLU is used here.
    out_t = lax.dot_general(
        new_q, axt_ref[0],
        dimension_numbers=(((0,), (0,)), ((), ())),      # W^T @ (A X)^T
        preferred_element_type=jnp.float32)              # (cols, N)
    out_ref[0] = jnp.maximum(out_t, 0.0)


# ------------------------------- glue / wrapper ------------------------------

def _pick_row_block(n, preferred=512):
    """Largest (8,128)-aligned row tile <= `preferred` that divides n.

    For realistic graph sizes this keeps Ahat row-tiles inside scoped VMEM
    (shrink `preferred` on v7x, or raise vmem_limit_bytes deliberately); the
    contraction dim is kept whole here, which is fine up to a few thousand
    nodes.
    """
    if n <= preferred:
        return n
    for bm in range(preferred, 127, -128):
        if n % bm == 0:
            return bm
    return n


def grcu_forward(gcn_w, A_list, node_embs_list, mask_list, params, scorer, k):
    """GRCU.forward: evolve the GCN weight with a mat-GRU, apply GCN each step."""
    T = len(A_list)
    N, F = node_embs_list[0].shape
    cols = gcn_w.shape[1]
    assert k == cols, "TopK k must equal out_feats (args.cols)"

    Z = jnp.stack(node_embs_list)                         # (T, N, F) f32
    Zt = jnp.transpose(Z, (0, 2, 1))                      # (T, F, N) f32
    A = jnp.stack(A_list)                                 # (T, N, N) f32
    M = jnp.stack([m.reshape(1, N) for m in mask_list])   # (T, 1, N)

    # Hoisted, timestep-invariant scorer normalization (no per-step sqrt).
    # (Faithful to the reference: no epsilon on the norm.)
    scorer_hat = scorer / jnp.linalg.norm(scorer)         # (F, 1)

    # ---- call 1: batched TopK scoring -------------------------------------
    scores = pl.pallas_call(
        _score_kernel,
        out_shape=jax.ShapeDtypeStruct((T, 1, N), jnp.float32),
        grid=(T,),
        in_specs=[pl.BlockSpec((1, F, N), lambda t: (t, 0, 0)),
                  pl.BlockSpec((F, 1), lambda t: (0, 0)),
                  pl.BlockSpec((1, 1, N), lambda t: (t, 0, 0))],
        out_specs=pl.BlockSpec((1, 1, N), lambda t: (t, 0, 0)),
        compiler_params=pltpu.CompilerParams(
            dimension_semantics=("parallel",)),
    )(Zt, scorer_hat, M)
    scores2d = scores[:, 0, :]                            # (T, N)

    # ---- call 2: batched AX_t = Ahat_t @ X_t (stored transposed) ----------
    bm = _pick_row_block(N)
    axt = pl.pallas_call(
        _ax_kernel,
        out_shape=jax.ShapeDtypeStruct((T, F, N), jnp.float32),
        grid=(T, N // bm),
        in_specs=[pl.BlockSpec((1, F, N), lambda t, m: (t, 0, 0)),
                  pl.BlockSpec((1, bm, N), lambda t, m: (t, m, 0))],
        out_specs=pl.BlockSpec((1, F, bm), lambda t, m: (t, 0, m)),
        compiler_params=pltpu.CompilerParams(
            dimension_semantics=("parallel", "parallel")),
    )(Zt.astype(jnp.bfloat16), A.astype(jnp.bfloat16))

    # ---- top-k selection + gather -----------------------------------------
    # TODO(synk): data-dependent top-k selection / dynamic row gather has no
    # clean static Pallas tile, so it stays in jax.lax / take_along_axis glue.
    vals, idx = lax.top_k(scores2d, k)                    # (T, k)
    valid = vals > -jnp.inf                               # replicate pad_with_last_val
    count = jnp.sum(valid.astype(jnp.int32), axis=1)      # (T,)
    last_valid = jnp.take_along_axis(
        idx, jnp.maximum(count - 1, 0)[:, None], axis=1)  # (T, 1)
    idx = jnp.where(jnp.arange(k)[None, :] < count[:, None], idx, last_valid)
    z_top = jnp.transpose(
        jnp.take_along_axis(Z, idx[:, :, None], axis=1), (0, 2, 1))       # (T, F, k)
    s_top = jnp.take_along_axis(scores2d, idx, axis=1)[:, None, :]        # (T, 1, k)

    # ---- call 3: fused sequential mat-GRU evolution + GCN ------------------
    w_all = jnp.concatenate([params["Wu"], params["Wr"], params["Wh"]], axis=0)
    u_ur = jnp.concatenate([params["Uu"], params["Ur"]], axis=0)
    b_all = jnp.concatenate([params["bu"], params["br"], params["bh"]], axis=0)

    out_t = pl.pallas_call(
        _gru_gcn_kernel,
        out_shape=jax.ShapeDtypeStruct((T, cols, N), jnp.float32),
        grid=(T,),
        in_specs=[pl.BlockSpec((1, F, cols), lambda t: (t, 0, 0)),    # z_top
                  pl.BlockSpec((1, 1, cols), lambda t: (t, 0, 0)),    # s_top
                  pl.BlockSpec((1, F, N), lambda t: (t, 0, 0)),       # (A X)^T
                  pl.BlockSpec((F, cols), lambda t: (0, 0)),          # Q_0
                  pl.BlockSpec((3 * F, F), lambda t: (0, 0)),         # [Wu;Wr;Wh]
                  pl.BlockSpec((2 * F, F), lambda t: (0, 0)),         # [Uu;Ur]
                  pl.BlockSpec((F, F), lambda t: (0, 0)),             # Uh
                  pl.BlockSpec((3 * F, cols), lambda t: (0, 0))],     # [bu;br;bh]
        out_specs=pl.BlockSpec((1, cols, N), lambda t: (t, 0, 0)),
        scratch_shapes=[pltpu.VMEM((F, cols), jnp.float32)],          # resident Q
        compiler_params=pltpu.CompilerParams(
            dimension_semantics=("arbitrary",)),                      # serial chain
    )(z_top, s_top, axt, gcn_w, w_all, u_ur, params["Uh"], b_all)

    out = jnp.transpose(out_t, (0, 2, 1))                 # (T, N, cols)
    return [out[t] for t in range(T)]


# ----------------------------- pure-JAX reference ----------------------------

def grcu_reference(gcn_w, A_list, node_embs_list, mask_list, params, scorer, k):
    """Straight f32 port of the PyTorch module for a tolerance check."""
    Q = gcn_w
    outs = []
    scorer_hat = scorer / jnp.linalg.norm(scorer)
    for t in range(len(A_list)):
        Z = node_embs_list[t]
        scores = Z @ scorer_hat + mask_list[t]                         # (N, 1)
        vals, idx = lax.top_k(scores[:, 0], k)
        valid = vals > -jnp.inf
        count = jnp.sum(valid.astype(jnp.int32))
        last_valid = idx[jnp.maximum(count - 1, 0)]
        idx = jnp.where(jnp.arange(k) < count, idx, last_valid)
        z_topk = (Z[idx] * jnp.tanh(scores[idx])).T                    # (rows, k)
        upd = jax.nn.sigmoid(params["Wu"] @ z_topk + params["Uu"] @ Q + params["bu"])
        rst = jax.nn.sigmoid(params["Wr"] @ z_topk + params["Ur"] @ Q + params["br"])
        hcap = jnp.tanh(params["Wh"] @ z_topk + params["Uh"] @ (rst * Q) + params["bh"])
        Q = (1.0 - upd) * Q + upd * hcap
        outs.append(jnp.maximum(A_list[t] @ (Z @ Q), 0.0))
    return outs


# --------------------------- parameter helpers --------------------------------

def xavier_uniform(key, shape):
    fan_in, fan_out = shape[0], shape[1]
    bound = math.sqrt(6.0 / (fan_in + fan_out))
    return jax.random.uniform(key, shape, jnp.float32, -bound, bound)


# ------------------------------------ main ------------------------------------

if __name__ == "__main__":
    # N nodes, in_feats ("rows"), out_feats ("cols" == top-k), T timesteps
    N, IN_FEATS, OUT_FEATS, T = 16, 8, 4, 3

    key = jax.random.PRNGKey(0)
    keys = jax.random.split(key, 16)

    params = {
        "Wu": xavier_uniform(keys[0], (IN_FEATS, IN_FEATS)),
        "Uu": xavier_uniform(keys[1], (IN_FEATS, IN_FEATS)),
        "bu": jnp.zeros((IN_FEATS, OUT_FEATS), jnp.float32),
        "Wr": xavier_uniform(keys[2], (IN_FEATS, IN_FEATS)),
        "Ur": xavier_uniform(keys[3], (IN_FEATS, IN_FEATS)),
        "br": jnp.zeros((IN_FEATS, OUT_FEATS), jnp.float32),
        "Wh": xavier_uniform(keys[4], (IN_FEATS, IN_FEATS)),
        "Uh": xavier_uniform(keys[5], (IN_FEATS, IN_FEATS)),
        "bh": jnp.zeros((IN_FEATS, OUT_FEATS), jnp.float32),
    }
    scorer = xavier_uniform(keys[6], (IN_FEATS, 1))             # TopK scorer
    gcn_w = xavier_uniform(keys[7], (IN_FEATS, OUT_FEATS))      # initial GCN weight

    A_list, node_embs_list, mask_list = [], [], []
    for t in range(T):
        ka, kx = jax.random.split(keys[8 + t])
        Aden = jax.random.uniform(ka, (N, N), jnp.float32)
        A_list.append(Aden / jnp.sum(Aden, axis=1, keepdims=True))   # row-norm Ahat
        node_embs_list.append(jax.random.normal(kx, (N, IN_FEATS), jnp.float32))
        mask_list.append(jnp.zeros((N, 1), jnp.float32))             # no masked nodes

    fwd = jax.jit(grcu_forward, static_argnames=("k",))
    out_seq = fwd(gcn_w, A_list, node_embs_list, mask_list, params, scorer,
                  k=OUT_FEATS)
    out_seq = jax.block_until_ready(out_seq)

    ref_seq = grcu_reference(gcn_w, A_list, node_embs_list, mask_list,
                             params, scorer, OUT_FEATS)

    assert all(o.shape == (N, OUT_FEATS) for o in out_seq)
    assert all(bool(jnp.all(jnp.isfinite(o))) for o in out_seq)
    # bf16 Ahat@X inputs + the (A@X)@W reordering -> loose but honest tolerance.
    for o, r in zip(out_seq, ref_seq):
        assert bool(jnp.allclose(o, r, atol=5e-2, rtol=5e-2)), \
            float(jnp.max(jnp.abs(o - r)))
    print("KERNEL_OK")
</pallas_src>

<mosaic_0001>
module attributes {stable_mosaic.version = 11 : i64} {
  func.func @_score_kernel(%arg0: i32, %arg1: memref<1x8x16xf32, #tpu.memory_space<vmem>>, %arg2: memref<8x1xf32, #tpu.memory_space<vmem>>, %arg3: memref<1x1x16xf32, #tpu.memory_space<vmem>>, %arg4: memref<1x1x16xf32, #tpu.memory_space<vmem>>) attributes {dimension_semantics = [#tpu.dimension_semantics<parallel>], iteration_bounds = array<i64: 3>, scalar_prefetch = 0 : i64, scratch_operands = 0 : i64, tpu.core_type = #tpu.core_type<tc>, window_params = [{transform_indices = @transform_0, window_bounds = array<i64: 1, 8, 16>}, {pipeline_mode = #tpu.pipeline_mode<synchronous>, transform_indices = @transform_1, window_bounds = array<i64: 8, 1>}, {transform_indices = @transform_2, window_bounds = array<i64: 1, 1, 16>}, {transform_indices = @transform_3, window_bounds = array<i64: 1, 1, 16>}]} {
    %c0 = arith.constant 0 : index
    %c0_0 = arith.constant 0 : index
    %c0_1 = arith.constant 0 : index
    %0 = vector.load %arg1[%c0, %c0_0, %c0_1] : memref<1x8x16xf32, #tpu.memory_space<vmem>>, vector<1x8x16xf32>
    %1 = vector.shape_cast %0 : vector<1x8x16xf32> to vector<8x16xf32>
    %c0_2 = arith.constant 0 : index
    %c0_3 = arith.constant 0 : index
    %2 = vector.load %arg2[%c0_2, %c0_3] : memref<8x1xf32, #tpu.memory_space<vmem>>, vector<8x1xf32>
    %3 = vector.broadcast %2 : vector<8x1xf32> to vector<8x16xf32>
    %4 = arith.mulf %1, %3 : vector<8x16xf32>
    %cst = arith.constant dense<0.000000e+00> : vector<16xf32>
    %5 = vector.multi_reduction <add>, %4, %cst [0] : vector<8x16xf32> to vector<16xf32>
    %6 = vector.shape_cast %5 : vector<16xf32> to vector<1x16xf32>
    %c0_4 = arith.constant 0 : index
    %c0_5 = arith.constant 0 : index
    %c0_6 = arith.constant 0 : index
    %7 = vector.load %arg3[%c0_4, %c0_5, %c0_6] : memref<1x1x16xf32, #tpu.memory_space<vmem>>, vector<1x1x16xf32>
    %8 = vector.shape_cast %7 : vector<1x1x16xf32> to vector<1x16xf32>
    %9 = arith.addf %6, %8 : vector<1x16xf32>
    %c0_7 = arith.constant 0 : index
    %c0_8 = arith.constant 0 : index
    %c0_9 = arith.constant 0 : index
    %10 = vector.load %arg4[%c0_7, %c0_8, %c0_9] : memref<1x1x16xf32, #tpu.memory_space<vmem>>, vector<1x1x16xf32>
    %11 = vector.shape_cast %10 : vector<1x1x16xf32> to vector<1x16xf32>
    %12 = vector.shape_cast %9 : vector<1x16xf32> to vector<1x1x16xf32>
    tpu.vector_store %arg4[%c0_7, %c0_8, %c0_9], %12 {strides = array<i32>} : memref<1x1x16xf32, #tpu.memory_space<vmem>>, vector<1x1x16xf32>,
    return
  }
  func.func @transform_0(%arg0: i32) -> (i32, i32, i32) {
    %c0_i32 = arith.constant 0 : i32
    %c0_i32_0 = arith.constant 0 : i32
    %c0_i32_1 = arith.constant 0 : i32
    return %arg0, %c0_i32, %c0_i32_0 : i32, i32, i32
  }
  func.func @transform_1(%arg0: i32) -> (i32, i32) {
    %c0_i32 = arith.constant 0 : i32
    %c0_i32_0 = arith.constant 0 : i32
    %c0_i32_1 = arith.constant 0 : i32
    return %c0_i32, %c0_i32_0 : i32, i32
  }
  func.func @transform_2(%arg0: i32) -> (i32, i32, i32) {
    %c0_i32 = arith.constant 0 : i32
    %c0_i32_0 = arith.constant 0 : i32
    %c0_i32_1 = arith.constant 0 : i32
    return %arg0, %c0_i32, %c0_i32_0 : i32, i32, i32
  }
  func.func @transform_3(%arg0: i32) -> (i32, i32, i32) {
    %c0_i32 = arith.constant 0 : i32
    %c0_i32_0 = arith.constant 0 : i32
    %c0_i32_1 = arith.constant 0 : i32
    return %arg0, %c0_i32, %c0_i32_0 : i32, i32, i32
  }
}

module attributes {stable_mosaic.version = 11 : i64} {
  func.func @_ax_kernel(%arg0: i32, %arg1: i32, %arg2: memref<1x8x16xbf16, #tpu.memory_space<vmem>>, %arg3: memref<1x16x16xbf16, #tpu.memory_space<vmem>>, %arg4: memref<1x8x16xf32, #tpu.memory_space<vmem>>) attributes {dimension_semantics = [#tpu.dimension_semantics<parallel>, #tpu.dimension_semantics<parallel>], iteration_bounds = array<i64: 3, 1>, scalar_prefetch = 0 : i64, scratch_operands = 0 : i64, tpu.core_type = #tpu.core_type<tc>, window_params = [{transform_indices = @transform_0, window_bounds = array<i64: 1, 8, 16>}, {transform_indices = @transform_1, window_bounds = array<i64: 1, 16, 16>}, {transform_indices = @transform_2, window_bounds = array<i64: 1, 8, 16>}]} {
    %c0 = arith.constant 0 : index
    %c0_0 = arith.constant 0 : index
    %c0_1 = arith.constant 0 : index
    %0 = vector.load %arg2[%c0, %c0_0, %c0_1] : memref<1x8x16xbf16, #tpu.memory_space<vmem>>, vector<1x8x16xbf16>
    %1 = vector.shape_cast %0 : vector<1x8x16xbf16> to vector<8x16xbf16>
    %c0_2 = arith.constant 0 : index
    %c0_3 = arith.constant 0 : index
    %c0_4 = arith.constant 0 : index
    %2 = vector.load %arg3[%c0_2, %c0_3, %c0_4] : memref<1x16x16xbf16, #tpu.memory_space<vmem>>, vector<1x16x16xbf16>
    %3 = vector.shape_cast %2 : vector<1x16x16xbf16> to vector<16x16xbf16>
    %cst = arith.constant dense<0.000000e+00> : vector<8x16xf32>
    %4 = tpu.matmul %1, %3, %cst {dimension_numbers = #tpu.dot_dimension_numbers<[1], [1], [0], [0], [0, 0, 1, 0], [], []>} : vector<8x16xbf16>, vector<16x16xbf16>, vector<8x16xf32> -> vector<8x16xf32>
    %c0_5 = arith.constant 0 : index
    %c0_6 = arith.constant 0 : index
    %c0_7 = arith.constant 0 : index
    %5 = vector.load %arg4[%c0_5, %c0_6, %c0_7] : memref<1x8x16xf32, #tpu.memory_space<vmem>>, vector<1x8x16xf32>
    %6 = vector.shape_cast %5 : vector<1x8x16xf32> to vector<8x16xf32>
    %7 = vector.shape_cast %4 : vector<8x16xf32> to vector<1x8x16xf32>
    tpu.vector_store %arg4[%c0_5, %c0_6, %c0_7], %7 {strides = array<i32>} : memref<1x8x16xf32, #tpu.memory_space<vmem>>, vector<1x8x16xf32>,
    return
  }
  func.func @transform_0(%arg0: i32, %arg1: i32) -> (i32, i32, i32) {
    %c0_i32 = arith.constant 0 : i32
    %c0_i32_0 = arith.constant 0 : i32
    %c0_i32_1 = arith.constant 0 : i32
    return %arg0, %c0_i32, %c0_i32_0 : i32, i32, i32
  }
  func.func @transform_1(%arg0: i32, %arg1: i32) -> (i32, i32, i32) {
    %c0_i32 = arith.constant 0 : i32
    %c0_i32_0 = arith.constant 0 : i32
    return %arg0, %arg1, %c0_i32 : i32, i32, i32
  }
  func.func @transform_2(%arg0: i32, %arg1: i32) -> (i32, i32, i32) {
    %c0_i32 = arith.constant 0 : i32
    %c0_i32_0 = arith.constant 0 : i32
    return %arg0, %c0_i32, %arg1 : i32, i32, i32
  }
}

module attributes {stable_mosaic.version = 11 : i64} {
  func.func @_gru_gcn_kernel(%arg0: i32, %arg1: memref<1x8x4xf32, #tpu.memory_space<vmem>>, %arg2: memref<1x1x4xf32, #tpu.memory_space<vmem>>, %arg3: memref<1x8x16xf32, #tpu.memory_space<vmem>>, %arg4: memref<8x4xf32, #tpu.memory_space<vmem>>, %arg5: memref<24x8xf32, #tpu.memory_space<vmem>>, %arg6: memref<16x8xf32, #tpu.memory_space<vmem>>, %arg7: memref<8x8xf32, #tpu.memory_space<vmem>>, %arg8: memref<24x4xf32, #tpu.memory_space<vmem>>, %arg9: memref<1x4x16xf32, #tpu.memory_space<vmem>>, %arg10: memref<8x4xf32, #tpu.memory_space<vmem>>) attributes {dimension_semantics = [#tpu.dimension_semantics<arbitrary>], iteration_bounds = array<i64: 3>, scalar_prefetch = 0 : i64, scratch_operands = 1 : i64, tpu.core_type = #tpu.core_type<tc>, window_params = [{transform_indices = @transform_0, window_bounds = array<i64: 1, 8, 4>}, {transform_indices = @transform_1, window_bounds = array<i64: 1, 1, 4>}, {transform_indices = @transform_2, window_bounds = array<i64: 1, 8, 16>}, {pipeline_mode = #tpu.pipeline_mode<synchronous>, transform_indices = @transform_3, window_bounds = array<i64: 8, 4>}, {pipeline_mode = #tpu.pipeline_mode<synchronous>, transform_indices = @transform_4, window_bounds = array<i64: 24, 8>}, {pipeline_mode = #tpu.pipeline_mode<synchronous>, transform_indices = @transform_5, window_bounds = array<i64: 16, 8>}, {pipeline_mode = #tpu.pipeline_mode<synchronous>, transform_indices = @transform_6, window_bounds = array<i64: 8, 8>}, {pipeline_mode = #tpu.pipeline_mode<synchronous>, transform_indices = @transform_7, window_bounds = array<i64: 24, 4>}, {transform_indices = @transform_8, window_bounds = array<i64: 1, 4, 16>}]} {
    %c0_i32 = arith.constant 0 : i32
    %0 = arith.cmpi eq, %arg0, %c0_i32 : i32
    %1 = arith.extui %0 : i1 to i32
    %c0_i32_0 = arith.constant 0 : i32
    %2 = arith.cmpi ne, %1, %c0_i32_0 : i32
    scf.if %2 {
      %c0_31 = arith.constant 0 : index
      %c0_32 = arith.constant 0 : index
      %53 = vector.load %arg4[%c0_31, %c0_32] : memref<8x4xf32, #tpu.memory_space<vmem>>, vector<8x4xf32>
      %c0_33 = arith.constant 0 : index
      %c0_34 = arith.constant 0 : index
      %54 = vector.load %arg10[%c0_33, %c0_34] : memref<8x4xf32, #tpu.memory_space<vmem>>, vector<8x4xf32>
      tpu.vector_store %arg10[%c0_33, %c0_34], %53 {strides = array<i32>} : memref<8x4xf32, #tpu.memory_space<vmem>>, vector<8x4xf32>,
    } else {
    }
    %c0 = arith.constant 0 : index
    %c0_1 = arith.constant 0 : index
    %3 = vector.load %arg10[%c0, %c0_1] : memref<8x4xf32, #tpu.memory_space<vmem>>, vector<8x4xf32>
    %c0_2 = arith.constant 0 : index
    %c0_3 = arith.constant 0 : index
    %c0_4 = arith.constant 0 : index
    %4 = vector.load %arg1[%c0_2, %c0_3, %c0_4] : memref<1x8x4xf32, #tpu.memory_space<vmem>>, vector<1x8x4xf32>
    %5 = vector.shape_cast %4 : vector<1x8x4xf32> to vector<8x4xf32>
    %c0_5 = arith.constant 0 : index
    %c0_6 = arith.constant 0 : index
    %c0_7 = arith.constant 0 : index
    %6 = vector.load %arg2[%c0_5, %c0_6, %c0_7] : memref<1x1x4xf32, #tpu.memory_space<vmem>>, vector<1x1x4xf32>
    %7 = vector.shape_cast %6 : vector<1x1x4xf32> to vector<1x4xf32>
    %8 = math.tanh %7 : vector<1x4xf32>
    %9 = vector.broadcast %8 : vector<1x4xf32> to vector<8x4xf32>
    %10 = arith.mulf %5, %9 : vector<8x4xf32>
    %c0_8 = arith.constant 0 : index
    %c0_9 = arith.constant 0 : index
    %11 = vector.load %arg5[%c0_8, %c0_9] : memref<24x8xf32, #tpu.memory_space<vmem>>, vector<24x8xf32>
    %cst = arith.constant dense<0.000000e+00> : vector<24x4xf32>
    %12 = tpu.matmul %11, %10, %cst {dimension_numbers = #tpu.dot_dimension_numbers<[1], [0], [0], [1], [0, 0, 1, 1], [], []>} : vector<24x8xf32>, vector<8x4xf32>, vector<24x4xf32> -> vector<24x4xf32>
    %c0_10 = arith.constant 0 : index
    %c0_11 = arith.constant 0 : index
    %13 = vector.load %arg8[%c0_10, %c0_11] : memref<24x4xf32, #tpu.memory_space<vmem>>, vector<24x4xf32>
    %14 = arith.addf %12, %13 : vector<24x4xf32>
    %c0_12 = arith.constant 0 : index
    %c0_13 = arith.constant 0 : index
    %15 = vector.load %arg6[%c0_12, %c0_13] : memref<16x8xf32, #tpu.memory_space<vmem>>, vector<16x8xf32>
    %cst_14 = arith.constant dense<0.000000e+00> : vector<16x4xf32>
    %16 = tpu.matmul %15, %3, %cst_14 {dimension_numbers = #tpu.dot_dimension_numbers<[1], [0], [0], [1], [0, 0, 1, 1], [], []>} : vector<16x8xf32>, vector<8x4xf32>, vector<16x4xf32> -> vector<16x4xf32>
    %17 = vector.extract_strided_slice %14 {offsets = [0, 0], sizes = [8, 4], strides = [1, 1]} : vector<24x4xf32> to vector<8x4xf32>
    %18 = vector.extract_strided_slice %16 {offsets = [0, 0], sizes = [8, 4], strides = [1, 1]} : vector<16x4xf32> to vector<8x4xf32>
    %19 = arith.addf %17, %18 : vector<8x4xf32>
    %20 = arith.negf %19 : vector<8x4xf32>
    %21 = math.exp %20 : vector<8x4xf32>
    %cst_15 = arith.constant 1.000000e+00 : f32
    %22 = vector.broadcast %cst_15 : f32 to vector<8x4xf32>
    %23 = arith.addf %22, %21 : vector<8x4xf32>
    %24 = arith.divf %22, %23 : vector<8x4xf32>
    %25 = vector.extract_strided_slice %14 {offsets = [8, 0], sizes = [8, 4], strides = [1, 1]} : vector<24x4xf32> to vector<8x4xf32>
    %26 = vector.extract_strided_slice %16 {offsets = [8, 0], sizes = [8, 4], strides = [1, 1]} : vector<16x4xf32> to vector<8x4xf32>
    %27 = arith.addf %25, %26 : vector<8x4xf32>
    %28 = arith.negf %27 : vector<8x4xf32>
    %29 = math.exp %28 : vector<8x4xf32>
    %cst_16 = arith.constant 1.000000e+00 : f32
    %30 = vector.broadcast %cst_16 : f32 to vector<8x4xf32>
    %31 = arith.addf %30, %29 : vector<8x4xf32>
    %32 = arith.divf %30, %31 : vector<8x4xf32>
    %33 = vector.extract_strided_slice %14 {offsets = [16, 0], sizes = [8, 4], strides = [1, 1]} : vector<24x4xf32> to vector<8x4xf32>
    %c0_17 = arith.constant 0 : index
    %c0_18 = arith.constant 0 : index
    %34 = vector.load %arg7[%c0_17, %c0_18] : memref<8x8xf32, #tpu.memory_space<vmem>>, vector<8x8xf32>
    %35 = arith.mulf %32, %3 : vector<8x4xf32>
    %cst_19 = arith.constant dense<0.000000e+00> : vector<8x4xf32>
    %36 = tpu.matmul %34, %35, %cst_19 {dimension_numbers = #tpu.dot_dimension_numbers<[1], [0], [0], [1], [0, 0, 1, 1], [], []>} : vector<8x8xf32>, vector<8x4xf32>, vector<8x4xf32> -> vector<8x4xf32>
    %37 = arith.addf %33, %36 : vector<8x4xf32>
    %38 = math.tanh %37 : vector<8x4xf32>
    %cst_20 = arith.constant 1.000000e+00 : f32
    %39 = vector.broadcast %cst_20 : f32 to vector<8x4xf32>
    %40 = arith.subf %39, %24 : vector<8x4xf32>
    %41 = arith.mulf %40, %3 : vector<8x4xf32>
    %42 = arith.mulf %24, %38 : vector<8x4xf32>
    %43 = arith.addf %41, %42 : vector<8x4xf32>
    %c0_21 = arith.constant 0 : index
    %c0_22 = arith.constant 0 : index
    %44 = vector.load %arg10[%c0_21, %c0_22] : memref<8x4xf32, #tpu.memory_space<vmem>>, vector<8x4xf32>
    tpu.vector_store %arg10[%c0_21, %c0_22], %43 {strides = array<i32>} : memref<8x4xf32, #tpu.memory_space<vmem>>, vector<8x4xf32>,
    %c0_23 = arith.constant 0 : index
    %c0_24 = arith.constant 0 : index
    %c0_25 = arith.constant 0 : index
    %45 = vector.load %arg3[%c0_23, %c0_24, %c0_25] : memref<1x8x16xf32, #tpu.memory_space<vmem>>, vector<1x8x16xf32>
    %46 = vector.shape_cast %45 : vector<1x8x16xf32> to vector<8x16xf32>
    %cst_26 = arith.constant dense<0.000000e+00> : vector<4x16xf32>
    %47 = tpu.matmul %43, %46, %cst_26 {dimension_numbers = #tpu.dot_dimension_numbers<[0], [0], [1], [1], [0, 1, 1, 1], [], []>} : vector<8x4xf32>, vector<8x16xf32>, vector<4x16xf32> -> vector<4x16xf32>
    %cst_27 = arith.constant 0.000000e+00 : f32
    %48 = vector.broadcast %cst_27 : f32 to vector<4x16xf32>
    %49 = arith.maximumf %47, %48 : vector<4x16xf32>
    %c0_28 = arith.constant 0 : index
    %c0_29 = arith.constant 0 : index
    %c0_30 = arith.constant 0 : index
    %50 = vector.load %arg9[%c0_28, %c0_29, %c0_30] : memref<1x4x16xf32, #tpu.memory_space<vmem>>, vector<1x4x16xf32>
    %51 = vector.shape_cast %50 : vector<1x4x16xf32> to vector<4x16xf32>
    %52 = vector.shape_cast %49 : vector<4x16xf32> to vector<1x4x16xf32>
    tpu.vector_store %arg9[%c0_28, %c0_29, %c0_30], %52 {strides = array<i32>} : memref<1x4x16xf32, #tpu.memory_space<vmem>>, vector<1x4x16xf32>,
    return
  }
  func.func @transform_0(%arg0: i32) -> (i32, i32, i32) {
    %c0_i32 = arith.constant 0 : i32
    %c0_i32_0 = arith.constant 0 : i32
    %c0_i32_1 = arith.constant 0 : i32
    return %arg0, %c0_i32, %c0_i32_0 : i32, i32, i32
  }
  func.func @transform_1(%arg0: i32) -> (i32, i32, i32) {
    %c0_i32 = arith.constant 0 : i32
    %c0_i32_0 = arith.constant 0 : i32
    %c0_i32_1 = arith.constant 0 : i32
    return %arg0, %c0_i32, %c0_i32_0 : i32, i32, i32
  }
  func.func @transform_2(%arg0: i32) -> (i32, i32, i32) {
    %c0_i32 = arith.constant 0 : i32
    %c0_i32_0 = arith.constant 0 : i32
    %c0_i32_1 = arith.constant 0 : i32
    return %arg0, %c0_i32, %c0_i32_0 : i32, i32, i32
  }
  func.func @transform_3(%arg0: i32) -> (i32, i32) {
    %c0_i32 = arith.constant 0 : i32
    %c0_i32_0 = arith.constant 0 : i32
    %c0_i32_1 = arith.constant 0 : i32
    return %c0_i32, %c0_i32_0 : i32, i32
  }
  func.func @transform_4(%arg0: i32) -> (i32, i32) {
    %c0_i32 = arith.constant 0 : i32
    %c0_i32_0 = arith.constant 0 : i32
    %c0_i32_1 = arith.constant 0 : i32
    return %c0_i32, %c0_i32_0 : i32, i32
  }
  func.func @transform_5(%arg0: i32) -> (i32, i32) {
    %c0_i32 = arith.constant 0 : i32
    %c0_i32_0 = arith.constant 0 : i32
    %c0_i32_1 = arith.constant 0 : i32
    return %c0_i32, %c0_i32_0 : i32, i32
  }
  func.func @transform_6(%arg0: i32) -> (i32, i32) {
    %c0_i32 = arith.constant 0 : i32
    %c0_i32_0 = arith.constant 0 : i32
    %c0_i32_1 = arith.constant 0 : i32
    return %c0_i32, %c0_i32_0 : i32, i32
  }
  func.func @transform_7(%arg0: i32) -> (i32, i32) {
    %c0_i32 = arith.constant 0 : i32
    %c0_i32_0 = arith.constant 0 : i32
    %c0_i32_1 = arith.constant 0 : i32
    return %c0_i32, %c0_i32_0 : i32, i32
  }
  func.func @transform_8(%arg0: i32) -> (i32, i32, i32) {
    %c0_i32 = arith.constant 0 : i32
    %c0_i32_0 = arith.constant 0 : i32
    %c0_i32_1 = arith.constant 0 : i32
    return %arg0, %c0_i32, %c0_i32_0 : i32, i32, i32
  }
}

</mosaic_0001>

<llo_original>
// kernel: grcu_forward.4
$region0: #{grcu_forward.4}
  #allocation0 [shape = 'u32[]', space=smem, size = 0x4, offset = 0x4, fixed_abs, tag = 'smem constant byte address 0x4 - core index']
  #allocation1 [shape = 'u32[72,128]{1,0:T(1,128)}', space=vmem, size = 0x9000, scoped, tag = 'internal scratch']
  %s0 = inlined_call_operand.vmem [shape: bf16[3,8,16], index: 0, kind: input, shape index: {}]
  %s1 = inlined_call_operand.vmem [shape: bf16[3,16,16], index: 1, kind: input, shape index: {}]
  %s2 = inlined_call_operand.vmem [shape: f32[3,8,16], index: 2, kind: output, shape index: {}]
  %s3 = sld [smem:[#allocation0]]
  $region41: #{grcu_forward.4} parent=0
    _
  %s5 = ssub.s32 1, %s3
  %s6 = scalar_select 0, %s5, %s3
  loop: start=0, step=1, limit=5
  $region2: #{grcu_forward.4} parent=0 // loop_pre_header
    _
  $region3: #{grcu_forward.4} parent=0 // loop_header
    %s8 = sphi 0, %s12
    %p9 = scmp.ge.s32.totalorder %s8, 5
    %s15 = sphi 0, %s27
    %s16 = sphi 0, %s23
    %s17 = sphi 0, %s15
    %s18 = sphi 0, %s16
    %s19 = sphi 0, %s17
    %s20 = sphi 0, %s18
    %s30 = sphi 0, %s32
    %s33 = sphi 0, %s30
    %s34 = sphi 0, %s33
    %s50 = sphi 0, %s34
    %s58 = sphi 0, %s60
    %s61 = sphi 0, %s58
    %s62 = sphi 0, %s61
    %s78 = sphi 0, %s62
    %s86 = sphi 0, %s88
    %s89 = sphi 0, %s86
    %s90 = sphi 0, %s89
    %s106 = sphi 0, %s90
  $region4: #{grcu_forward.4} parent=0 // loop_header_branch
    %11 = sbr.rel (%p9) target = $region8
  $region5: #{grcu_forward.4} parent=0 // loop_body
    %s13 = ssub.s32 %s8, 1
    %s14 = ssub.s32 %s8, 2
    %s21 = sadd.s32 1, %s16
    %p22 = scmp.ge.s32.totalorder %s21, 1
    %s23 = scalar_select %p22, 0, %s21
    %s24 = sadd.s32 1, %s15
    %s25 = scalar_select %p22, %s24, %s15
    %p26 = scmp.ge.s32.totalorder %s25, 3
    %s27 = scalar_select %p26, 0, %s25
    %s28 = ssub.s32 %s15, %s27
    %p29 = scmp.eq.s32.totalorder %s28, 0
    %s31 = sadd.s32 %s30, 1
    %s32 = scalar_select %p29, %s30, %s31
    %p35 = pneg %p29
    %p36 = scmp.eq.s32.totalorder %s8, 2
    %p37 = por %p35, %p36
    %p38 = scmp.ne.s32.totalorder %s30, %s33
    %p39 = scmp.eq.s32.totalorder %s8, 0
    %p40 = por %p38, %p39
    %p41 = scmp.ne.s32.totalorder %s30, %s33
    %p42 = scmp.eq.s32.totalorder %s13, 2
    %p43 = por %p41, %p42
    %p44 = scmp.ne.s32.totalorder %s33, %s34
    %p45 = scmp.eq.s32.totalorder %s13, 0
    %p46 = por %p44, %p45
    %p47 = scmp.ne.s32.totalorder %s33, %s34
    %p48 = scmp.eq.s32.totalorder %s14, 2
    %p49 = por %p47, %p48
    %p51 = scmp.ne.s32.totalorder %s34, %s50
    %p52 = scmp.eq.s32.totalorder %s14, 0
    %p53 = por %p51, %p52
    %s54 = ssub.s32 %s15, %s27
    %s55 = ssub.s32 %s16, %s23
    %s56 = sor.u32 %s54, %s55
    %p57 = scmp.eq.s32.totalorder %s56, 0
    %s59 = sadd.s32 %s58, 1
    %s60 = scalar_select %p57, %s58, %s59
    %p63 = pneg %p57
    %p64 = scmp.eq.s32.totalorder %s8, 2
    %p65 = por %p63, %p64
    %p66 = scmp.ne.s32.totalorder %s58, %s61
    %p67 = scmp.eq.s32.totalorder %s8, 0
    %p68 = por %p66, %p67
    %p69 = scmp.ne.s32.totalorder %s58, %s61
    %p70 = scmp.eq.s32.totalorder %s13, 2
    %p71 = por %p69, %p70
    %p72 = scmp.ne.s32.totalorder %s61, %s62
    %p73 = scmp.eq.s32.totalorder %s13, 0
    %p74 = por %p72, %p73
    %p75 = scmp.ne.s32.totalorder %s61, %s62
    %p76 = scmp.eq.s32.totalorder %s14, 2
    %p77 = por %p75, %p76
    %p79 = scmp.ne.s32.totalorder %s62, %s78
    %p80 = scmp.eq.s32.totalorder %s14, 0
    %p81 = por %p79, %p80
    %s82 = ssub.s32 %s15, %s27
    %s83 = ssub.s32 %s16, %s23
    %s84 = sor.u32 %s82, %s83
    %p85 = scmp.eq.s32.totalorder %s84, 0
    %s87 = sadd.s32 %s86, 1
    %s88 = scalar_select %p85, %s86, %s87
    %p91 = pneg %p85
    %p92 = scmp.eq.s32.totalorder %s8, 2
    %p93 = por %p91, %p92
    %p94 = scmp.ne.s32.totalorder %s86, %s89
    %p95 = scmp.eq.s32.totalorder %s8, 0
    %p96 = por %p94, %p95
    %p97 = scmp.ne.s32.totalorder %s86, %s89
    %p98 = scmp.eq.s32.totalorder %s13, 2
    %p99 = por %p97, %p98
    %p100 = scmp.ne.s32.totalorder %s89, %s90
    %p101 = scmp.eq.s32.totalorder %s13, 0
    %p102 = por %p100, %p101
    %p103 = scmp.ne.s32.totalorder %s89, %s90
    %p104 = scmp.eq.s32.totalorder %s14, 2
    %p105 = por %p103, %p104
    %p107 = scmp.ne.s32.totalorder %s90, %s106
    %p108 = scmp.eq.s32.totalorder %s14, 0
    %p109 = por %p107, %p108
    %p110 = scmp.le.s32.totalorder 1, %s8
    %p111 = scmp.lt.s32.totalorder %s8, 4
    %p112 = pnand %p110, %p111
    %p113 = pneg %p112
    // Predicated region
    $region9: #{grcu_forward.4} parent=5 // pred_check
      _
    $region10: #{grcu_forward.4} parent=5 // pred_check_branch
      %115 = sbr.rel (%p112) target = $region12
    $region11: #{grcu_forward.4} parent=5 // pred_region
      %s116 = ssub.s32 %s8, 1
    $region12: #{grcu_forward.4} parent=5 // pred_fallthru
      _
    %p117 = scmp.lt.s32.totalorder %s8, 3
    // Predicated region
    $region13: #{grcu_forward.4} parent=5 // pred_check
      %p118 = pneg %p117
    $region14: #{grcu_forward.4} parent=5 // pred_check_branch
      %120 = sbr.rel (%p118) target = $region16
    $region15: #{grcu_forward.4} parent=5 // pred_region
      // Predicated region
      $region17: #{grcu_forward.4} parent=15 // pred_check
        %p121 = pneg %p40
      $region18: #{grcu_forward.4} parent=15 // pred_check_branch
        %123 = sbr.rel (%p121) target = $region20
      $region19: #{grcu_forward.4} parent=15 // pred_region
        %p124 = scmp.lt.s32.totalorder %s15, 2
        %s125 = scalar_select %p124, %s15, 2
        %s126 = smul.addr %s125, 4
        %s127 = scalar_lea.vmem %s0, %s126
      $region20: #{grcu_forward.4} parent=15 // pred_fallthru
        _
      // Predicated region
      $region21: #{grcu_forward.4} parent=15 // pred_check
        %p128 = pneg %p68
      $region22: #{grcu_forward.4} parent=15 // pred_check_branch
        %130 = sbr.rel (%p128) target = $region24
      $region23: #{grcu_forward.4} parent=15 // pred_region
        %s131 = smul.u32 2, %s16
        %p132 = scmp.lt.s32.totalorder %s15, 2
        %s133 = scalar_select %p132, %s15, 2
        %p134 = scmp.lt.s32.totalorder %s131, 1
        %s135 = scalar_select %p134, %s131, 1
        %s136 = smul.addr %s133, 2
        %s137 = sadd.s32 %s135, %s136
        %s138 = smul.addr %s137, 4
        %s139 = scalar_lea.vmem %s1, %s138
        %s140 = smul.u32 2, %s16
      $region24: #{grcu_forward.4} parent=15 // pred_fallthru
        _
    $region16: #{grcu_forward.4} parent=5 // pred_fallthru
      _
    %p141 = scmp.le.s32.totalorder 1, %s8
    %p142 = scmp.lt.s32.totalorder %s8, 4
    %p143 = pnand %p141, %p142
    %p144 = pneg %p143
    // Predicated region
    $region25: #{grcu_forward.4} parent=5 // pred_check
      _
    $region26: #{grcu_forward.4} parent=5 // pred_check_branch
      %146 = sbr.rel (%p143) target = $region28
    $region27: #{grcu_forward.4} parent=5 // pred_region
      %s147 = ssub.s32 %s8, 1
      %p148 = scmp.lt.s32.totalorder %s17, 2
      %s149 = scalar_select %p148, %s17, 2
      %s150 = smul.addr %s149, 4
      %s151 = scalar_lea.vmem %s0, %s150
      %p152 = pneg %p46
      %p153 = pneg %p43
      %s154 = smul.u32 2, %s18
      %p155 = scmp.lt.s32.totalorder %s17, 2
      %s156 = scalar_select %p155, %s17, 2
      %p157 = scmp.lt.s32.totalorder %s154, 1
      %s158 = scalar_select %p157, %s154, 1
      %s159 = smul.addr %s156, 2
      %s160 = sadd.s32 %s158, %s159
      %s161 = smul.addr %s160, 4
      %s162 = scalar_lea.vmem %s1, %s161
      %p163 = pneg %p74
      %p164 = pneg %p71
      %p165 = pneg %p102
      %p166 = pneg %p99
      %p167 = scmp.lt.s32.totalorder %s17, 2
      %s168 = scalar_select %p167, %s17, 2
      %p169 = scmp.lt.s32.totalorder %s18, 0
      %s170 = scalar_select %p169, %s18, 0
      %s171 = sadd.s32 %s170, %s168
      %s172 = smul.addr %s171, 8
      %s173 = scalar_lea.vmem %s2, %s172
      %p174 = scmp.lt.s32.totalorder %s17, 2
      %s175 = scalar_select %p174, %s17, 2
      %s176 = smul.addr %s175, 4
      %s177 = scalar_lea.vmem %s0, %s176
      %s178 = smul.u32 2, %s18
      %p179 = scmp.lt.s32.totalorder %s17, 2
      %s180 = scalar_select %p179, %s17, 2
      %p181 = scmp.lt.s32.totalorder %s178, 1
      %s182 = scalar_select %p181, %s178, 1
      %s183 = smul.addr %s180, 2
      %s184 = sadd.s32 %s182, %s183
      %s185 = smul.addr %s184, 4
      %s186 = scalar_lea.vmem %s1, %s185
      %s187 = smul.u32 2, %s18
      %p188 = scmp.lt.s32.totalorder %s17, 2
      %s189 = scalar_select %p188, %s17, 2
      %p190 = scmp.lt.s32.totalorder %s18, 0
      %s191 = scalar_select %p190, %s18, 0
      %s192 = sadd.s32 %s191, %s189
      %s193 = smul.addr %s192, 8
      %s194 = scalar_lea.vmem %s2, %s193
      %v196 = vld [vmem:[%s177] sm:$0xf]
      %v197 = vld [vmem:[%s186] sm:$0xf]
      %v198 = vld [vmem:[%s186 + $0x4] sm:$0xf]
      %v201 = vunpack.c.l.b16 %v197
      %v202 = vunpack.c.l.b16 %v198
      %v203 = vpack.c.b16 %v202, %v201
      %vm204 = vcmask 130048
      %v206 = vsel %vm204, %v196, 0
      %v209 = vsel %vm204, %v203, 0
      %211 = vmatpush.bf16.xpose.msra.mxu0 0
      %212 = vmatpush.bf16.xpose.msra.mxu0 0
      %213 = vmatpush.bf16.xpose.msra.mxu0 0
      %214 = vmatpush.bf16.xpose.msra.mxu0 0
      %215 = vmatpush.bf16.xpose.msra.mxu0 0
      %216 = vmatpush.bf16.xpose.msra.mxu0 0
      %217 = vmatpush.bf16.xpose.msra.mxu0 0
      %218 = vmatpush.bf16.xpose.msra.mxu0 %v209
      %219 = vmatmul.bf16.gmra.mxu0 %v206
      %v220 = vpop.f32.mrf.mxu0
      %v221 = vadd.f32 0.0, %v220
      %v222 = vpop.f32.mrf.mxu0
      %223 = vdwg.mxu0
      %224 = vst.msk [vmem:[%s194] sm:$0xff] %vm204, %v221
      %p225 = scmp.lt.s32.totalorder %s17, 2
      %s226 = scalar_select %p225, %s17, 2
      %p227 = scmp.lt.s32.totalorder %s18, 0
      %s228 = scalar_select %p227, %s18, 0
      %s229 = sadd.s32 %s228, %s226
      %s230 = smul.addr %s229, 8
      %s231 = scalar_lea.vmem %s2, %s230
      // Predicated region
      $region29: #{grcu_forward.4} parent=27 // pred_check
        %p232 = pneg %p99
      $region30: #{grcu_forward.4} parent=27 // pred_check_branch
        %234 = sbr.rel (%p232) target = $region32
      $region31: #{grcu_forward.4} parent=27 // pred_region
        _
      $region32: #{grcu_forward.4} parent=27 // pred_fallthru
        _
    $region28: #{grcu_forward.4} parent=5 // pred_fallthru
      _
    %p235 = scmp.le.s32.totalorder 2, %s8
    // Predicated region
    $region33: #{grcu_forward.4} parent=5 // pred_check
      %p236 = pneg %p235
    $region34: #{grcu_forward.4} parent=5 // pred_check_branch
      %238 = sbr.rel (%p236) target = $region36
    $region35: #{grcu_forward.4} parent=5 // pred_region
      %s239 = ssub.s32 %s8, 2
      // Predicated region
      $region37: #{grcu_forward.4} parent=35 // pred_check
        %p240 = pneg %p105
      $region38: #{grcu_forward.4} parent=35 // pred_check_branch
        %242 = sbr.rel (%p240) target = $region40
      $region39: #{grcu_forward.4} parent=35 // pred_region
        %p243 = scmp.lt.s32.totalorder %s19, 2
        %s244 = scalar_select %p243, %s19, 2
        %p245 = scmp.lt.s32.totalorder %s20, 0
        %s246 = scalar_select %p245, %s20, 0
        %s247 = sadd.s32 %s246, %s244
        %s248 = smul.addr %s247, 8
        %s249 = scalar_lea.vmem %s2, %s248
      $region40: #{grcu_forward.4} parent=35 // pred_fallthru
        _
    $region36: #{grcu_forward.4} parent=5 // pred_fallthru
      _
  $region6: #{grcu_forward.4} parent=0 // loop_footer
    %s12 = sadd.s32 1, %s8
  $region7: #{grcu_forward.4} parent=0 // loop_footer_branch
    %7 = sbr.rel target = $region3
  $region8: #{grcu_forward.4} parent=0 // loop_exit
    _

// kernel: grcu_forward.3
$region0: #{grcu_forward.3}
  #allocation0 [shape = 'u32[]', space=smem, size = 0x4, offset = 0x4, fixed_abs, tag = 'smem constant byte address 0x4 - core index']
  #allocation1 [shape = 'u32[72,128]{1,0:T(1,128)}', space=vmem, size = 0x9000, scoped, tag = 'internal scratch']
  %s0 = inlined_call_operand.vmem [shape: f32[3,8,16], index: 0, kind: input, shape index: {}]
  %s1 = inlined_call_operand.vmem [shape: f32[8,1], index: 1, kind: input, shape index: {}]
  %s2 = inlined_call_operand.vmem [shape: f32[3,1,16], index: 2, kind: input, shape index: {}]
  %s3 = inlined_call_operand.vmem [shape: f32[3,1,16], index: 3, kind: output, shape index: {}]
  %s4 = sld [smem:[#allocation0]]
  $region45: #{grcu_forward.3} parent=0
    _
  %s6 = ssub.s32 1, %s4
  %s7 = scalar_select 0, %s6, %s4
  loop: start=0, step=1, limit=5
  $region2: #{grcu_forward.3} parent=0 // loop_pre_header
    _
  $region3: #{grcu_forward.3} parent=0 // loop_header
    %s9 = sphi 0, %s13
    %p10 = scmp.ge.s32.totalorder %s9, 5
    %s19 = sphi 0, %s21
    %s22 = sphi 0, %s19
    %s23 = sphi 0, %s22
    %s39 = sphi 0, %s23
    %s43 = sphi 0, %s43
    %s45 = sphi 0, %s43
    %s46 = sphi 0, %s45
    %s60 = sphi 0, %s46
    %s66 = sphi 0, %s68
    %s69 = sphi 0, %s66
    %s70 = sphi 0, %s69
    %s86 = sphi 0, %s70
    %s92 = sphi 0, %s94
    %s95 = sphi 0, %s92
    %s96 = sphi 0, %s95
    %s112 = sphi 0, %s96
  $region4: #{grcu_forward.3} parent=0 // loop_header_branch
    %12 = sbr.rel (%p10) target = $region8
  $region5: #{grcu_forward.3} parent=0 // loop_body
    %s14 = ssub.s32 %s9, 1
    %s15 = ssub.s32 %s9, 2
    %s16 = sadd.s32 %s9, 1
    %s17 = ssub.s32 %s9, %s16
    %p18 = scmp.eq.s32.totalorder %s17, 0
    %s20 = sadd.s32 %s19, 1
    %s21 = scalar_select %p18, %s19, %s20
    %p24 = pneg %p18
    %p25 = scmp.eq.s32.totalorder %s9, 2
    %p26 = por %p24, %p25
    %p27 = scmp.ne.s32.totalorder %s19, %s22
    %p28 = scmp.eq.s32.totalorder %s9, 0
    %p29 = por %p27, %p28
    %p30 = scmp.ne.s32.totalorder %s19, %s22
    %p31 = scmp.eq.s32.totalorder %s14, 2
    %p32 = por %p30, %p31
    %p33 = scmp.ne.s32.totalorder %s22, %s23
    %p34 = scmp.eq.s32.totalorder %s14, 0
    %p35 = por %p33, %p34
    %p36 = scmp.ne.s32.totalorder %s22, %s23
    %p37 = scmp.eq.s32.totalorder %s15, 2
    %p38 = por %p36, %p37
    %p40 = scmp.ne.s32.totalorder %s23, %s39
    %p41 = scmp.eq.s32.totalorder %s15, 0
    %p42 = por %p40, %p41
    %s44 = sadd.s32 %s43, 1
    %p47 = scmp.eq.s32.totalorder %s9, 2
    %p48 = scmp.ne.s32.totalorder %s43, %s45
    %p49 = scmp.eq.s32.totalorder %s9, 0
    %p50 = por %p48, %p49
    %p51 = scmp.ne.s32.totalorder %s43, %s45
    %p52 = scmp.eq.s32.totalorder %s14, 2
    %p53 = por %p51, %p52
    %p54 = scmp.ne.s32.totalorder %s45, %s46
    %p55 = scmp.eq.s32.totalorder %s14, 0
    %p56 = por %p54, %p55
    %p57 = scmp.ne.s32.totalorder %s45, %s46
    %p58 = scmp.eq.s32.totalorder %s15, 2
    %p59 = por %p57, %p58
    %p61 = scmp.ne.s32.totalorder %s46, %s60
    %p62 = scmp.eq.s32.totalorder %s15, 0
    %p63 = por %p61, %p62
    %s64 = ssub.s32 %s9, %s16
    %p65 = scmp.eq.s32.totalorder %s64, 0
    %s67 = sadd.s32 %s66, 1
    %s68 = scalar_select %p65, %s66, %s67
    %p71 = pneg %p65
    %p72 = scmp.eq.s32.totalorder %s9, 2
    %p73 = por %p71, %p72
    %p74 = scmp.ne.s32.totalorder %s66, %s69
    %p75 = scmp.eq.s32.totalorder %s9, 0
    %p76 = por %p74, %p75
    %p77 = scmp.ne.s32.totalorder %s66, %s69
    %p78 = scmp.eq.s32.totalorder %s14, 2
    %p79 = por %p77, %p78
    %p80 = scmp.ne.s32.totalorder %s69, %s70
    %p81 = scmp.eq.s32.totalorder %s14, 0
    %p82 = por %p80, %p81
    %p83 = scmp.ne.s32.totalorder %s69, %s70
    %p84 = scmp.eq.s32.totalorder %s15, 2
    %p85 = por %p83, %p84
    %p87 = scmp.ne.s32.totalorder %s70, %s86
    %p88 = scmp.eq.s32.totalorder %s15, 0
    %p89 = por %p87, %p88
    %s90 = ssub.s32 %s9, %s16
    %p91 = scmp.eq.s32.totalorder %s90, 0
    %s93 = sadd.s32 %s92, 1
    %s94 = scalar_select %p91, %s92, %s93
    %p97 = pneg %p91
    %p98 = scmp.eq.s32.totalorder %s9, 2
    %p99 = por %p97, %p98
    %p100 = scmp.ne.s32.totalorder %s92, %s95
    %p101 = scmp.eq.s32.totalorder %s9, 0
    %p102 = por %p100, %p101
    %p103 = scmp.ne.s32.totalorder %s92, %s95
    %p104 = scmp.eq.s32.totalorder %s14, 2
    %p105 = por %p103, %p104
    %p106 = scmp.ne.s32.totalorder %s95, %s96
    %p107 = scmp.eq.s32.totalorder %s14, 0
    %p108 = por %p106, %p107
    %p109 = scmp.ne.s32.totalorder %s95, %s96
    %p110 = scmp.eq.s32.totalorder %s15, 2
    %p111 = por %p109, %p110
    %p113 = scmp.ne.s32.totalorder %s96, %s112
    %p114 = scmp.eq.s32.totalorder %s15, 0
    %p115 = por %p113, %p114
    %p116 = scmp.le.s32.totalorder 1, %s9
    %p117 = scmp.lt.s32.totalorder %s9, 4
    %p118 = pnand %p116, %p117
    %p119 = pneg %p118
    // Predicated region
    $region9: #{grcu_forward.3} parent=5 // pred_check
      _
    $region10: #{grcu_forward.3} parent=5 // pred_check_branch
      %121 = sbr.rel (%p118) target = $region12
    $region11: #{grcu_forward.3} parent=5 // pred_region
      %s122 = ssub.s32 %s9, 1
      // Predicated region
      $region13: #{grcu_forward.3} parent=11 // pred_check
        %p123 = pneg %p56
      $region14: #{grcu_forward.3} parent=11 // pred_check_branch
        %125 = sbr.rel (%p123) target = $region16
      $region15: #{grcu_forward.3} parent=11 // pred_region
        _
      $region16: #{grcu_forward.3} parent=11 // pred_fallthru
        _
    $region12: #{grcu_forward.3} parent=5 // pred_fallthru
      _
    %p126 = scmp.lt.s32.totalorder %s9, 3
    // Predicated region
    $region17: #{grcu_forward.3} parent=5 // pred_check
      %p127 = pneg %p126
    $region18: #{grcu_forward.3} parent=5 // pred_check_branch
      %129 = sbr.rel (%p127) target = $region20
    $region19: #{grcu_forward.3} parent=5 // pred_region
      // Predicated region
      $region21: #{grcu_forward.3} parent=19 // pred_check
        %p130 = pneg %p29
      $region22: #{grcu_forward.3} parent=19 // pred_check_branch
        %132 = sbr.rel (%p130) target = $region24
      $region23: #{grcu_forward.3} parent=19 // pred_region
        %p133 = scmp.lt.s32.totalorder %s9, 2
        %s134 = scalar_select %p133, %s9, 2
        %s135 = smul.addr %s134, 8
        %s136 = scalar_lea.vmem %s0, %s135
      $region24: #{grcu_forward.3} parent=19 // pred_fallthru
        _
      // Predicated region
      $region25: #{grcu_forward.3} parent=19 // pred_check
        %p137 = pneg %p76
      $region26: #{grcu_forward.3} parent=19 // pred_check_branch
        %139 = sbr.rel (%p137) target = $region28
      $region27: #{grcu_forward.3} parent=19 // pred_region
        %p140 = scmp.lt.s32.totalorder %s9, 2
        %s141 = scalar_select %p140, %s9, 2
        %s142 = scalar_lea.vmem %s2, %s141
      $region28: #{grcu_forward.3} parent=19 // pred_fallthru
        _
    $region20: #{grcu_forward.3} parent=5 // pred_fallthru
      _
    %p143 = scmp.le.s32.totalorder 1, %s9
    %p144 = scmp.lt.s32.totalorder %s9, 4
    %p145 = pnand %p143, %p144
    %p146 = pneg %p145
    // Predicated region
    $region29: #{grcu_forward.3} parent=5 // pred_check
      _
    $region30: #{grcu_forward.3} parent=5 // pred_check_branch
      %148 = sbr.rel (%p145) target = $region32
    $region31: #{grcu_forward.3} parent=5 // pred_region
      %s149 = ssub.s32 %s9, 1
      %p150 = scmp.lt.s32.totalorder %s14, 2
      %s151 = scalar_select %p150, %s14, 2
      %s152 = smul.addr %s151, 8
      %s153 = scalar_lea.vmem %s0, %s152
      %p154 = pneg %p35
      %p155 = pneg %p32
      %p156 = pneg %p56
      %p157 = pneg %p53
      %p158 = scmp.lt.s32.totalorder %s14, 2
      %s159 = scalar_select %p158, %s14, 2
      %s160 = scalar_lea.vmem %s2, %s159
      %p161 = pneg %p82
      %p162 = pneg %p79
      %p163 = pneg %p108
      %p164 = pneg %p105
      %p165 = scmp.lt.s32.totalorder %s14, 2
      %s166 = scalar_select %p165, %s14, 2
      %s167 = scalar_lea.vmem %s3, %s166
      %p168 = scmp.lt.s32.totalorder %s14, 2
      %s169 = scalar_select %p168, %s14, 2
      %s170 = smul.addr %s169, 8
      %s171 = scalar_lea.vmem %s0, %s170
      %p172 = scmp.lt.s32.totalorder %s14, 2
      %s173 = scalar_select %p172, %s14, 2
      %s174 = scalar_lea.vmem %s2, %s173
      %p175 = scmp.lt.s32.totalorder %s14, 2
      %s176 = scalar_select %p175, %s14, 2
      %s177 = scalar_lea.vmem %s3, %s176
      %v178 = vld [vmem:[%s171] sm:$0xff]
      %v179 = vld [vmem:[%s1] sm:$0xff]
      %181 = vset.pattern.permute.xlu0 0
      %182 = vperm.xlu0 %181, %v179
      %v183 = vpop.permute.xlu0 %182
      %v185 = vmul.f32 %v178, %v183
      %vm186 = vcmask 130048
      %v187 = vsel %vm186, %v185, 0.0
      %v188 = vrot.slane %v187, 4
      %v189 = vadd.f32 %v187, %v188
      %v190 = vrot.slane %v189, 2
      %v191 = vadd.f32 %v189, %v190
      %v192 = vrot.slane %v191, 1
      %v193 = vadd.f32 %v191, %v192
      %v194 = vld [vmem:[%s174] sm:$0x1]
      %v195 = vadd.f32 %v193, %v194
      %vm196 = vcmask 122880
      %197 = vst.msk [vmem:[%s177] sm:$0x1] %vm196, %v195
      %p198 = scmp.lt.s32.totalorder %s14, 2
      %s199 = scalar_select %p198, %s14, 2
      %s200 = scalar_lea.vmem %s3, %s199
      // Predicated region
      $region33: #{grcu_forward.3} parent=31 // pred_check
        %p201 = pneg %p105
      $region34: #{grcu_forward.3} parent=31 // pred_check_branch
        %203 = sbr.rel (%p201) target = $region36
      $region35: #{grcu_forward.3} parent=31 // pred_region
        _
      $region36: #{grcu_forward.3} parent=31 // pred_fallthru
        _
    $region32: #{grcu_forward.3} parent=5 // pred_fallthru
      _
    %p204 = scmp.le.s32.totalorder 2, %s9
    // Predicated region
    $region37: #{grcu_forward.3} parent=5 // pred_check
      %p205 = pneg %p204
    $region38: #{grcu_forward.3} parent=5 // pred_check_branch
      %207 = sbr.rel (%p205) target = $region40
    $region39: #{grcu_forward.3} parent=5 // pred_region
      %s208 = ssub.s32 %s9, 2
      // Predicated region
      $region41: #{grcu_forward.3} parent=39 // pred_check
        %p209 = pneg %p111
      $region42: #{grcu_forward.3} parent=39 // pred_check_branch
        %211 = sbr.rel (%p209) target = $region44
      $region43: #{grcu_forward.3} parent=39 // pred_region
        %p212 = scmp.lt.s32.totalorder %s15, 2
        %s213 = scalar_select %p212, %s15, 2
        %s214 = scalar_lea.vmem %s3, %s213
      $region44: #{grcu_forward.3} parent=39 // pred_fallthru
        _
    $region40: #{grcu_forward.3} parent=5 // pred_fallthru
      _
  $region6: #{grcu_forward.3} parent=0 // loop_footer
    %s13 = sadd.s32 1, %s9
  $region7: #{grcu_forward.3} parent=0 // loop_footer_branch
    %8 = sbr.rel target = $region3
  $region8: #{grcu_forward.3} parent=0 // loop_exit
    _

// kernel: grcu_forward.5
$region0: #{grcu_forward.5}
  #allocation0 [shape = 'u32[]', space=smem, size = 0x4, offset = 0x4, fixed_abs, tag = 'smem constant byte address 0x4 - core index']
  #allocation1 [shape = 'u32[72,128]{1,0:T(1,128)}', space=vmem, size = 0x9000, scoped, tag = 'internal scratch']
  #allocation2 [shape = 'f32[8,4]{1,0:T(8,128)}', space=vmem, size = 0x1000, scoped, tag = 'scratch operand']
  %s0 = inlined_call_operand.vmem [shape: f32[3,8,4], index: 0, kind: input, shape index: {}]
  %s1 = inlined_call_operand.vmem [shape: f32[3,1,4], index: 1, kind: input, shape index: {}]
  %s2 = inlined_call_operand.vmem [shape: f32[3,8,16], index: 2, kind: input, shape index: {}]
  %s3 = inlined_call_operand.vmem [shape: f32[8,4], index: 3, kind: input, shape index: {}]
  %s4 = inlined_call_operand.vmem [shape: f32[24,8], index: 4, kind: input, shape index: {}]
  %s5 = inlined_call_operand.vmem [shape: f32[16,8], index: 5, kind: input, shape index: {}]
  %s6 = inlined_call_operand.vmem [shape: f32[8,8], index: 6, kind: input, shape index: {}]
  %s7 = inlined_call_operand.vmem [shape: f32[24,4], index: 7, kind: input, shape index: {}]
  %s8 = inlined_call_operand.vmem [shape: f32[3,4,16], index: 8, kind: output, shape index: {}]
  %s9 = sld [smem:[#allocation0]]
  $region69: #{grcu_forward.5} parent=0
    _
  %s11 = ssub.s32 1, %s9
  %s12 = scalar_select 0, %s11, %s9
  loop: start=0, step=1, limit=5
  $region2: #{grcu_forward.5} parent=0 // loop_pre_header
    _
  $region3: #{grcu_forward.5} parent=0 // loop_header
    %s14 = sphi 0, %s18
    %p15 = scmp.ge.s32.totalorder %s14, 5
    %s24 = sphi 0, %s26
    %s27 = sphi 0, %s24
    %s28 = sphi 0, %s27
    %s44 = sphi 0, %s28
    %s50 = sphi 0, %s52
    %s53 = sphi 0, %s50
    %s54 = sphi 0, %s53
    %s70 = sphi 0, %s54
    %s76 = sphi 0, %s78
    %s79 = sphi 0, %s76
    %s80 = sphi 0, %s79
    %s96 = sphi 0, %s80
    %s100 = sphi 0, %s100
    %s102 = sphi 0, %s100
    %s103 = sphi 0, %s102
    %s117 = sphi 0, %s103
    %s121 = sphi 0, %s121
    %s123 = sphi 0, %s121
    %s124 = sphi 0, %s123
    %s138 = sphi 0, %s124
    %s142 = sphi 0, %s142
    %s144 = sphi 0, %s142
    %s145 = sphi 0, %s144
    %s159 = sphi 0, %s145
    %s163 = sphi 0, %s163
    %s165 = sphi 0, %s163
    %s166 = sphi 0, %s165
    %s180 = sphi 0, %s166
    %s184 = sphi 0, %s184
    %s186 = sphi 0, %s184
    %s187 = sphi 0, %s186
    %s201 = sphi 0, %s187
    %s207 = sphi 0, %s209
    %s210 = sphi 0, %s207
    %s211 = sphi 0, %s210
    %s227 = sphi 0, %s211
  $region4: #{grcu_forward.5} parent=0 // loop_header_branch
    %17 = sbr.rel (%p15) target = $region8
  $region5: #{grcu_forward.5} parent=0 // loop_body
    %s19 = ssub.s32 %s14, 1
    %s20 = ssub.s32 %s14, 2
    %s21 = sadd.s32 %s14, 1
    %s22 = ssub.s32 %s14, %s21
    %p23 = scmp.eq.s32.totalorder %s22, 0
    %s25 = sadd.s32 %s24, 1
    %s26 = scalar_select %p23, %s24, %s25
    %p29 = pneg %p23
    %p30 = scmp.eq.s32.totalorder %s14, 2
    %p31 = por %p29, %p30
    %p32 = scmp.ne.s32.totalorder %s24, %s27
    %p33 = scmp.eq.s32.totalorder %s14, 0
    %p34 = por %p32, %p33
    %p35 = scmp.ne.s32.totalorder %s24, %s27
    %p36 = scmp.eq.s32.totalorder %s19, 2
    %p37 = por %p35, %p36
    %p38 = scmp.ne.s32.totalorder %s27, %s28
    %p39 = scmp.eq.s32.totalorder %s19, 0
    %p40 = por %p38, %p39
    %p41 = scmp.ne.s32.totalorder %s27, %s28
    %p42 = scmp.eq.s32.totalorder %s20, 2
    %p43 = por %p41, %p42
    %p45 = scmp.ne.s32.totalorder %s28, %s44
    %p46 = scmp.eq.s32.totalorder %s20, 0
    %p47 = por %p45, %p46
    %s48 = ssub.s32 %s14, %s21
    %p49 = scmp.eq.s32.totalorder %s48, 0
    %s51 = sadd.s32 %s50, 1
    %s52 = scalar_select %p49, %s50, %s51
    %p55 = pneg %p49
    %p56 = scmp.eq.s32.totalorder %s14, 2
    %p57 = por %p55, %p56
    %p58 = scmp.ne.s32.totalorder %s50, %s53
    %p59 = scmp.eq.s32.totalorder %s14, 0
    %p60 = por %p58, %p59
    %p61 = scmp.ne.s32.totalorder %s50, %s53
    %p62 = scmp.eq.s32.totalorder %s19, 2
    %p63 = por %p61, %p62
    %p64 = scmp.ne.s32.totalorder %s53, %s54
    %p65 = scmp.eq.s32.totalorder %s19, 0
    %p66 = por %p64, %p65
    %p67 = scmp.ne.s32.totalorder %s53, %s54
    %p68 = scmp.eq.s32.totalorder %s20, 2
    %p69 = por %p67, %p68
    %p71 = scmp.ne.s32.totalorder %s54, %s70
    %p72 = scmp.eq.s32.totalorder %s20, 0
    %p73 = por %p71, %p72
    %s74 = ssub.s32 %s14, %s21
    %p75 = scmp.eq.s32.totalorder %s74, 0
    %s77 = sadd.s32 %s76, 1
    %s78 = scalar_select %p75, %s76, %s77
    %p81 = pneg %p75
    %p82 = scmp.eq.s32.totalorder %s14, 2
    %p83 = por %p81, %p82
    %p84 = scmp.ne.s32.totalorder %s76, %s79
    %p85 = scmp.eq.s32.totalorder %s14, 0
    %p86 = por %p84, %p85
    %p87 = scmp.ne.s32.totalorder %s76, %s79
    %p88 = scmp.eq.s32.totalorder %s19, 2
    %p89 = por %p87, %p88
    %p90 = scmp.ne.s32.totalorder %s79, %s80
    %p91 = scmp.eq.s32.totalorder %s19, 0
    %p92 = por %p90, %p91
    %p93 = scmp.ne.s32.totalorder %s79, %s80
    %p94 = scmp.eq.s32.totalorder %s20, 2
    %p95 = por %p93, %p94
    %p97 = scmp.ne.s32.totalorder %s80, %s96
    %p98 = scmp.eq.s32.totalorder %s20, 0
    %p99 = por %p97, %p98
    %s101 = sadd.s32 %s100, 1
    %p104 = scmp.eq.s32.totalorder %s14, 2
    %p105 = scmp.ne.s32.totalorder %s100, %s102
    %p106 = scmp.eq.s32.totalorder %s14, 0
    %p107 = por %p105, %p106
    %p108 = scmp.ne.s32.totalorder %s100, %s102
    %p109 = scmp.eq.s32.totalorder %s19, 2
    %p110 = por %p108, %p109
    %p111 = scmp.ne.s32.totalorder %s102, %s103
    %p112 = scmp.eq.s32.totalorder %s19, 0
    %p113 = por %p111, %p112
    %p114 = scmp.ne.s32.totalorder %s102, %s103
    %p115 = scmp.eq.s32.totalorder %s20, 2
    %p116 = por %p114, %p115
    %p118 = scmp.ne.s32.totalorder %s103, %s117
    %p119 = scmp.eq.s32.totalorder %s20, 0
    %p120 = por %p118, %p119
    %s122 = sadd.s32 %s121, 1
    %p125 = scmp.eq.s32.totalorder %s14, 2
    %p126 = scmp.ne.s32.totalorder %s121, %s123
    %p127 = scmp.eq.s32.totalorder %s14, 0
    %p128 = por %p126, %p127
    %p129 = scmp.ne.s32.totalorder %s121, %s123
    %p130 = scmp.eq.s32.totalorder %s19, 2
    %p131 = por %p129, %p130
    %p132 = scmp.ne.s32.totalorder %s123, %s124
    %p133 = scmp.eq.s32.totalorder %s19, 0
    %p134 = por %p132, %p133
    %p135 = scmp.ne.s32.totalorder %s123, %s124
    %p136 = scmp.eq.s32.totalorder %s20, 2
    %p137 = por %p135, %p136
    %p139 = scmp.ne.s32.totalorder %s124, %s138
    %p140 = scmp.eq.s32.totalorder %s20, 0
    %p141 = por %p139, %p140
    %s143 = sadd.s32 %s142, 1
    %p146 = scmp.eq.s32.totalorder %s14, 2
    %p147 = scmp.ne.s32.totalorder %s142, %s144
    %p148 = scmp.eq.s32.totalorder %s14, 0
    %p149 = por %p147, %p148
    %p150 = scmp.ne.s32.totalorder %s142, %s144
    %p151 = scmp.eq.s32.totalorder %s19, 2
    %p152 = por %p150, %p151
    %p153 = scmp.ne.s32.totalorder %s144, %s145
    %p154 = scmp.eq.s32.totalorder %s19, 0
    %p155 = por %p153, %p154
    %p156 = scmp.ne.s32.totalorder %s144, %s145
    %p157 = scmp.eq.s32.totalorder %s20, 2
    %p158 = por %p156, %p157
    %p160 = scmp.ne.s32.totalorder %s145, %s159
    %p161 = scmp.eq.s32.totalorder %s20, 0
    %p162 = por %p160, %p161
    %s164 = sadd.s32 %s163, 1
    %p167 = scmp.eq.s32.totalorder %s14, 2
    %p168 = scmp.ne.s32.totalorder %s163, %s165
    %p169 = scmp.eq.s32.totalorder %s14, 0
    %p170 = por %p168, %p169
    %p171 = scmp.ne.s32.totalorder %s163, %s165
    %p172 = scmp.eq.s32.totalorder %s19, 2
    %p173 = por %p171, %p172
    %p174 = scmp.ne.s32.totalorder %s165, %s166
    %p175 = scmp.eq.s32.totalorder %s19, 0
    %p176 = por %p174, %p175
    %p177 = scmp.ne.s32.totalorder %s165, %s166
    %p178 = scmp.eq.s32.totalorder %s20, 2
    %p179 = por %p177, %p178
    %p181 = scmp.ne.s32.totalorder %s166, %s180
    %p182 = scmp.eq.s32.totalorder %s20, 0
    %p183 = por %p181, %p182
    %s185 = sadd.s32 %s184, 1
    %p188 = scmp.eq.s32.totalorder %s14, 2
    %p189 = scmp.ne.s32.totalorder %s184, %s186
    %p190 = scmp.eq.s32.totalorder %s14, 0
    %p191 = por %p189, %p190
    %p192 = scmp.ne.s32.totalorder %s184, %s186
    %p193 = scmp.eq.s32.totalorder %s19, 2
    %p194 = por %p192, %p193
    %p195 = scmp.ne.s32.totalorder %s186, %s187
    %p196 = scmp.eq.s32.totalorder %s19, 0
    %p197 = por %p195, %p196
    %p198 = scmp.ne.s32.totalorder %s186, %s187
    %p199 = scmp.eq.s32.totalorder %s20, 2
    %p200 = por %p198, %p199
    %p202 = scmp.ne.s32.totalorder %s187, %s201
    %p203 = scmp.eq.s32.totalorder %s20, 0
    %p204 = por %p202, %p203
    %s205 = ssub.s32 %s14, %s21
    %p206 = scmp.eq.s32.totalorder %s205, 0
    %s208 = sadd.s32 %s207, 1
    %s209 = scalar_select %p206, %s207, %s208
    %p212 = pneg %p206
    %p213 = scmp.eq.s32.totalorder %s14, 2
    %p214 = por %p212, %p213
    %p215 = scmp.ne.s32.totalorder %s207, %s210
    %p216 = scmp.eq.s32.totalorder %s14, 0
    %p217 = por %p215, %p216
    %p218 = scmp.ne.s32.totalorder %s207, %s210
    %p219 = scmp.eq.s32.totalorder %s19, 2
    %p220 = por %p218, %p219
    %p221 = scmp.ne.s32.totalorder %s210, %s211
    %p222 = scmp.eq.s32.totalorder %s19, 0
    %p223 = por %p221, %p222
    %p224 = scmp.ne.s32.totalorder %s210, %s211
    %p225 = scmp.eq.s32.totalorder %s20, 2
    %p226 = por %p224, %p225
    %p228 = scmp.ne.s32.totalorder %s211, %s227
    %p229 = scmp.eq.s32.totalorder %s20, 0
    %p230 = por %p228, %p229
    %p231 = scmp.le.s32.totalorder 1, %s14
    %p232 = scmp.lt.s32.totalorder %s14, 4
    %p233 = pnand %p231, %p232
    %p234 = pneg %p233
    // Predicated region
    $region9: #{grcu_forward.5} parent=5 // pred_check
      _
    $region10: #{grcu_forward.5} parent=5 // pred_check_branch
      %236 = sbr.rel (%p233) target = $region12
    $region11: #{grcu_forward.5} parent=5 // pred_region
      %s237 = ssub.s32 %s14, 1
      // Predicated region
      $region13: #{grcu_forward.5} parent=11 // pred_check
        %p238 = pneg %p113
      $region14: #{grcu_forward.5} parent=11 // pred_check_branch
        %240 = sbr.rel (%p238) target = $region16
      $region15: #{grcu_forward.5} parent=11 // pred_region
        _
      $region16: #{grcu_forward.5} parent=11 // pred_fallthru
        _
      // Predicated region
      $region17: #{grcu_forward.5} parent=11 // pred_check
        %p241 = pneg %p134
      $region18: #{grcu_forward.5} parent=11 // pred_check_branch
        %243 = sbr.rel (%p241) target = $region20
      $region19: #{grcu_forward.5} parent=11 // pred_region
        _
      $region20: #{grcu_forward.5} parent=11 // pred_fallthru
        _
      // Predicated region
      $region21: #{grcu_forward.5} parent=11 // pred_check
        %p244 = pneg %p155
      $region22: #{grcu_forward.5} parent=11 // pred_check_branch
        %246 = sbr.rel (%p244) target = $region24
      $region23: #{grcu_forward.5} parent=11 // pred_region
        _
      $region24: #{grcu_forward.5} parent=11 // pred_fallthru
        _
      // Predicated region
      $region25: #{grcu_forward.5} parent=11 // pred_check
        %p247 = pneg %p176
      $region26: #{grcu_forward.5} parent=11 // pred_check_branch
        %249 = sbr.rel (%p247) target = $region28
      $region27: #{grcu_forward.5} parent=11 // pred_region
        _
      $region28: #{grcu_forward.5} parent=11 // pred_fallthru
        _
      // Predicated region
      $region29: #{grcu_forward.5} parent=11 // pred_check
        %p250 = pneg %p197
      $region30: #{grcu_forward.5} parent=11 // pred_check_branch
        %252 = sbr.rel (%p250) target = $region32
      $region31: #{grcu_forward.5} parent=11 // pred_region
        _
      $region32: #{grcu_forward.5} parent=11 // pred_fallthru
        _
    $region12: #{grcu_forward.5} parent=5 // pred_fallthru
      _
    %p253 = scmp.lt.s32.totalorder %s14, 3
    // Predicated region
    $region33: #{grcu_forward.5} parent=5 // pred_check
      %p254 = pneg %p253
    $region34: #{grcu_forward.5} parent=5 // pred_check_branch
      %256 = sbr.rel (%p254) target = $region36
    $region35: #{grcu_forward.5} parent=5 // pred_region
      // Predicated region
      $region37: #{grcu_forward.5} parent=35 // pred_check
        %p257 = pneg %p34
      $region38: #{grcu_forward.5} parent=35 // pred_check_branch
        %259 = sbr.rel (%p257) target = $region40
      $region39: #{grcu_forward.5} parent=35 // pred_region
        %p260 = scmp.lt.s32.totalorder %s14, 2
        %s261 = scalar_select %p260, %s14, 2
        %s262 = smul.addr %s261, 8
        %s263 = scalar_lea.vmem %s0, %s262
      $region40: #{grcu_forward.5} parent=35 // pred_fallthru
        _
      // Predicated region
      $region41: #{grcu_forward.5} parent=35 // pred_check
        %p264 = pneg %p60
      $region42: #{grcu_forward.5} parent=35 // pred_check_branch
        %266 = sbr.rel (%p264) target = $region44
      $region43: #{grcu_forward.5} parent=35 // pred_region
        %p267 = scmp.lt.s32.totalorder %s14, 2
        %s268 = scalar_select %p267, %s14, 2
        %s269 = scalar_lea.vmem %s1, %s268
      $region44: #{grcu_forward.5} parent=35 // pred_fallthru
        _
      // Predicated region
      $region45: #{grcu_forward.5} parent=35 // pred_check
        %p270 = pneg %p86
      $region46: #{grcu_forward.5} parent=35 // pred_check_branch
        %272 = sbr.rel (%p270) target = $region48
      $region47: #{grcu_forward.5} parent=35 // pred_region
        %p273 = scmp.lt.s32.totalorder %s14, 2
        %s274 = scalar_select %p273, %s14, 2
        %s275 = smul.addr %s274, 8
        %s276 = scalar_lea.vmem %s2, %s275
      $region48: #{grcu_forward.5} parent=35 // pred_fallthru
        _
    $region36: #{grcu_forward.5} parent=5 // pred_fallthru
      _
    %p277 = scmp.le.s32.totalorder 1, %s14
    %p278 = scmp.lt.s32.totalorder %s14, 4
    %p279 = pnand %p277, %p278
    %p280 = pneg %p279
    // Predicated region
    $region49: #{grcu_forward.5} parent=5 // pred_check
      _
    $region50: #{grcu_forward.5} parent=5 // pred_check_branch
      %282 = sbr.rel (%p279) target = $region52
    $region51: #{grcu_forward.5} parent=5 // pred_region
      %s283 = ssub.s32 %s14, 1
      %p284 = scmp.lt.s32.totalorder %s19, 2
      %s285 = scalar_select %p284, %s19, 2
      %s286 = smul.addr %s285, 8
      %s287 = scalar_lea.vmem %s0, %s286
      %p288 = pneg %p40
      %p289 = pneg %p37
      %p290 = scmp.lt.s32.totalorder %s19, 2
      %s291 = scalar_select %p290, %s19, 2
      %s292 = scalar_lea.vmem %s1, %s291
      %p293 = pneg %p66
      %p294 = pneg %p63
      %p295 = scmp.lt.s32.totalorder %s19, 2
      %s296 = scalar_select %p295, %s19, 2
      %s297 = smul.addr %s296, 8
      %s298 = scalar_lea.vmem %s2, %s297
      %p299 = pneg %p92
      %p300 = pneg %p89
      %p301 = pneg %p113
      %p302 = pneg %p110
      %p303 = pneg %p134
      %p304 = pneg %p131
      %p305 = pneg %p155
      %p306 = pneg %p152
      %p307 = pneg %p176
      %p308 = pneg %p173
      %p309 = pneg %p197
      %p310 = pneg %p194
      %p311 = pneg %p223
      %p312 = pneg %p220
      %p313 = scmp.lt.s32.totalorder %s19, 2
      %s314 = scalar_select %p313, %s19, 2
      %s315 = smul.addr %s314, 4
      %s316 = scalar_lea.vmem %s8, %s315
      %p317 = scmp.lt.s32.totalorder %s19, 2
      %s318 = scalar_select %p317, %s19, 2
      %s319 = smul.addr %s318, 8
      %s320 = scalar_lea.vmem %s0, %s319
      %p321 = scmp.lt.s32.totalorder %s19, 2
      %s322 = scalar_select %p321, %s19, 2
      %s323 = scalar_lea.vmem %s1, %s322
      %p324 = scmp.lt.s32.totalorder %s19, 2
      %s325 = scalar_select %p324, %s19, 2
      %s326 = smul.addr %s325, 8
      %s327 = scalar_lea.vmem %s2, %s326
      %p328 = scmp.lt.s32.totalorder %s19, 2
      %s329 = scalar_select %p328, %s19, 2
      %s330 = smul.addr %s329, 4
      %s331 = scalar_lea.vmem %s8, %s330
      %p332 = scmp.eq.s32.totalorder %s19, 0
      // Predicated region
      $region53: #{grcu_forward.5} parent=51 // pred_check
        %p333 = pneg %p332
      $region54: #{grcu_forward.5} parent=51 // pred_check_branch
        %335 = sbr.rel (%p333) target = $region56
      $region55: #{grcu_forward.5} parent=51 // pred_region
        %v336 = vld [vmem:[%s3] sm:$0xff]
        %vm337 = vcmask 31744
        %338 = vst.msk [vmem:[#allocation2] sm:$0xff] %vm337, %v336
      $region56: #{grcu_forward.5} parent=51 // pred_fallthru
        _
      %v339 = vld [vmem:[#allocation2] sm:$0xff]
      %v340 = vld [vmem:[%s320] sm:$0xff]
      %v341 = vld [vmem:[%s323] sm:$0x1]
      %v342 = vtanh.pop %v341
      %v344 = vperm.slane %v342, 0
      %v346 = vmul.f32 %v340, %v344
      %v347 = vld [vmem:[%s4] sm:$0xff]
      %v348 = vld [vmem:[%s4 + $0x8] sm:$0xff]
      %v349 = vld [vmem:[%s4 + $0x10] sm:$0xff]
      %v350 = vld [vmem:[%s7] sm:$0xff]
      %v351 = vld [vmem:[%s7 + $0x8] sm:$0xff]
      %v352 = vld [vmem:[%s7 + $0x10] sm:$0xff]
      %vm353 = vcmask 64512
      %v355 = vsel %vm353, %v347, 0
      %v358 = vsel %vm353, %v348, 0
      %v361 = vsel %vm353, %v349, 0
      %363 = vmatpush.msra.mxu0 0.0
      %364 = vmatpush.msra.mxu0 0.0
      %365 = vmatpush.msra.mxu0 0.0
      %366 = vmatpush.msra.mxu0 0.0
      %367 = vmatpush.msra.mxu0 0.0
      %368 = vmatpush.msra.mxu0 0.0
      %369 = vmatpush.msra.mxu0 0.0
      %370 = vmatpush.msra.mxu0 0.0
      %371 = vmatpush.msra.mxu0 0.0
      %372 = vmatpush.msra.mxu0 0.0
      %373 = vmatpush.msra.mxu0 0.0
      %374 = vmatpush.msra.mxu0 0.0
      %375 = vmatpush.msra.mxu0 0.0
      %376 = vmatpush.msra.mxu0 0.0
      %377 = vmatpush.msra.mxu0 0.0
      %378 = vmatpush.msra.mxu0 %v346
      %379 = vmatmul.f32.gmra.mxu0 %v355
      %v380 = vpop.f32.mrf.mxu0
      %v381 = vadd.f32 %v350, %v380
      %382 = vmatmul.f32.gmra.mxu0 %v358
      %v383 = vpop.f32.mrf.mxu0
      %v384 = vadd.f32 %v351, %v383
      %385 = vmatmul.f32.gmra.mxu0 %v361
      %v386 = vpop.f32.mrf.mxu0
      %v387 = vadd.f32 %v352, %v386
      %388 = vdwg.mxu0
      %v389 = vld [vmem:[%s5] sm:$0xff]
      %v390 = vld [vmem:[%s5 + $0x8] sm:$0xff]
      %v392 = vsel %vm353, %v389, 0
      %v395 = vsel %vm353, %v390, 0
      %397 = vmatpush.msra.mxu0 0.0
      %398 = vmatpush.msra.mxu0 0.0
      %399 = vmatpush.msra.mxu0 0.0
      %400 = vmatpush.msra.mxu0 0.0
      %401 = vmatpush.msra.mxu0 0.0
      %402 = vmatpush.msra.mxu0 0.0
      %403 = vmatpush.msra.mxu0 0.0
      %404 = vmatpush.msra.mxu0 0.0
      %405 = vmatpush.msra.mxu0 0.0
      %406 = vmatpush.msra.mxu0 0.0
      %407 = vmatpush.msra.mxu0 0.0
      %408 = vmatpush.msra.mxu0 0.0
      %409 = vmatpush.msra.mxu0 0.0
      %410 = vmatpush.msra.mxu0 0.0
      %411 = vmatpush.msra.mxu0 0.0
      %412 = vmatpush.msra.mxu0 %v339
      %413 = vmatmul.f32.gmra.mxu0 %v392
      %v414 = vpop.f32.mrf.mxu0
      %v415 = vadd.f32 0.0, %v414
      %416 = vmatmul.f32.gmra.mxu0 %v395
      %v417 = vpop.f32.mrf.mxu0
      %v418 = vadd.f32 0.0, %v417
      %419 = vdwg.mxu0
      %v420 = vadd.f32 %v381, %v415
      %v421 = vxor.u32 %v420, 2147483648
      %v422 = vmul.f32 %v421, 1.442695
      %v423 = vpow.pop %v422
      %v424 = vadd.f32 %v423, 1.0
      %v425 = vrcp.pop %v424
      %v426 = vmul.f32 %v424, %v425
      %v427 = vsub.f32 1.0, %v426
      %v428 = vmul.f32 %v425, %v427
      %v429 = vadd.f32 %v425, %v428
      %vm430 = vweird.f32 %v424
      %vm431 = vweird.f32 %v425
      %vm432 = vmor %vm430, %vm431
      %v433 = vsel %vm432, %v425, %v429
      %v434 = vand.u32 2147483647, %v424
      %vm435 = vcmp.eq.f32.partialorder %v434, 8.507059e+37
      %v436 = vand.u32 %v424, 2147483648
      %v437 = vor.u32 1.1754944e-38, %v436
      %v438 = vsel %vm435, %v437, %v433
      %v439 = vmul.f32 1.0, %v438
      %v440 = vadd.f32 %v384, %v418
      %v441 = vxor.u32 %v440, 2147483648
      %v442 = vmul.f32 %v441, 1.442695
      %v443 = vpow.pop %v442
      %v444 = vadd.f32 %v443, 1.0
      %v445 = vrcp.pop %v444
      %v446 = vmul.f32 %v444, %v445
      %v447 = vsub.f32 1.0, %v446
      %v448 = vmul.f32 %v445, %v447
      %v449 = vadd.f32 %v445, %v448
      %vm450 = vweird.f32 %v444
      %vm451 = vweird.f32 %v445
      %vm452 = vmor %vm450, %vm451
      %v453 = vsel %vm452, %v445, %v449
      %v454 = vand.u32 2147483647, %v444
      %vm455 = vcmp.eq.f32.partialorder %v454, 8.507059e+37
      %v456 = vand.u32 %v444, 2147483648
      %v457 = vor.u32 1.1754944e-38, %v456
      %v458 = vsel %vm455, %v457, %v453
      %v459 = vmul.f32 1.0, %v458
      %v460 = vld [vmem:[%s6] sm:$0xff]
      %v461 = vmul.f32 %v459, %v339
      %v463 = vsel %vm353, %v460, 0
      %465 = vmatpush.msra.mxu0 0.0
      %466 = vmatpush.msra.mxu0 0.0
      %467 = vmatpush.msra.mxu0 0.0
      %468 = vmatpush.msra.mxu0 0.0
      %469 = vmatpush.msra.mxu0 0.0
      %470 = vmatpush.msra.mxu0 0.0
      %471 = vmatpush.msra.mxu0 0.0
      %472 = vmatpush.msra.mxu0 0.0
      %473 = vmatpush.msra.mxu0 0.0
      %474 = vmatpush.msra.mxu0 0.0
      %475 = vmatpush.msra.mxu0 0.0
      %476 = vmatpush.msra.mxu0 0.0
      %477 = vmatpush.msra.mxu0 0.0
      %478 = vmatpush.msra.mxu0 0.0
      %479 = vmatpush.msra.mxu0 0.0
      %480 = vmatpush.msra.mxu0 %v461
      %481 = vmatmul.f32.gmra.mxu0 %v463
      %v482 = vpop.f32.mrf.mxu0
      %v483 = vadd.f32 0.0, %v482
      %484 = vdwg.mxu0
      %v485 = vadd.f32 %v387, %v483
      %v486 = vtanh.pop %v485
      %v487 = vsub.f32 1.0, %v439
      %v488 = vmul.f32 %v487, %v339
      %v489 = vmul.f32 %v439, %v486
      %v490 = vadd.f32 %v488, %v489
      %vm491 = vcmask 31744
      %492 = vst.msk [vmem:[#allocation2] sm:$0xff] %vm491, %v490
      %v493 = vld [vmem:[%s327] sm:$0xff]
      %494 = vxpose.xlu0.b32.start [1/16] %v490, 128
      %495 = vxpose.xlu0.b32.cont [2/16] 0.0, 128
      %496 = vxpose.xlu0.b32.cont [3/16] 0.0, 128
      %497 = vxpose.xlu0.b32.cont [4/16] 0.0, 128
      %498 = vxpose.xlu0.b32.cont [5/16] 0.0, 128
      %499 = vxpose.xlu0.b32.cont [6/16] 0.0, 128
      %500 = vxpose.xlu0.b32.cont [7/16] 0.0, 128
      %501 = vxpose.xlu0.b32.cont [8/16] 0.0, 128
      %502 = vxpose.xlu0.b32.cont [9/16] 0.0, 128
      %503 = vxpose.xlu0.b32.cont [10/16] 0.0, 128
      %504 = vxpose.xlu0.b32.cont [11/16] 0.0, 128
      %505 = vxpose.xlu0.b32.cont [12/16] 0.0, 128
      %506 = vxpose.xlu0.b32.cont [13/16] 0.0, 128
      %507 = vxpose.xlu0.b32.cont [14/16] 0.0, 128
      %508 = vxpose.xlu0.b32.cont [15/16] 0.0, 128
      %509 = vxpose.xlu0.b32.end [16/16] 0.0, 128
      %v510 = vpop.trf.xlu0
      %v511 = vpop.trf.xlu0
      %v512 = vpop.trf.xlu0
      %v513 = vpop.trf.xlu0
      %v514 = vpop.trf.xlu0
      %v515 = vpop.trf.xlu0
      %v516 = vpop.trf.xlu0
      %v517 = vpop.trf.xlu0
      %v518 = vpop.trf.xlu0
      %v519 = vpop.trf.xlu0
      %v520 = vpop.trf.xlu0
      %v521 = vpop.trf.xlu0
      %v522 = vpop.trf.xlu0
      %v523 = vpop.trf.xlu0
      %v524 = vpop.trf.xlu0
      %v525 = vpop.trf.xlu0
      %v527 = vsel %vm353, %v510, 0
      %529 = vmatpush.msra.mxu0 0.0
      %530 = vmatpush.msra.mxu0 0.0
      %531 = vmatpush.msra.mxu0 0.0
      %532 = vmatpush.msra.mxu0 0.0
      %533 = vmatpush.msra.mxu0 0.0
      %534 = vmatpush.msra.mxu0 0.0
      %535 = vmatpush.msra.mxu0 0.0
      %536 = vmatpush.msra.mxu0 0.0
      %537 = vmatpush.msra.mxu0 0.0
      %538 = vmatpush.msra.mxu0 0.0
      %539 = vmatpush.msra.mxu0 0.0
      %540 = vmatpush.msra.mxu0 0.0
      %541 = vmatpush.msra.mxu0 0.0
      %542 = vmatpush.msra.mxu0 0.0
      %543 = vmatpush.msra.mxu0 0.0
      %544 = vmatpush.msra.mxu0 %v493
      %545 = vmatmul.f32.gmra.mxu0 %v527
      %v546 = vpop.f32.mrf.mxu0
      %v547 = vadd.f32 0.0, %v546
      %548 = vdwg.mxu0
      %v549 = vmax.f32 %v547, 0.0
      %vm550 = vcmask 125952
      %551 = vst.msk [vmem:[%s331] sm:$0xf] %vm550, %v549
      %p552 = scmp.lt.s32.totalorder %s19, 2
      %s553 = scalar_select %p552, %s19, 2
      %s554 = smul.addr %s553, 4
      %s555 = scalar_lea.vmem %s8, %s554
      // Predicated region
      $region57: #{grcu_forward.5} parent=51 // pred_check
        %p556 = pneg %p220
      $region58: #{grcu_forward.5} parent=51 // pred_check_branch
        %558 = sbr.rel (%p556) target = $region60
      $region59: #{grcu_forward.5} parent=51 // pred_region
        _
      $region60: #{grcu_forward.5} parent=51 // pred_fallthru
        _
    $region52: #{grcu_forward.5} parent=5 // pred_fallthru
      _
    %p559 = scmp.le.s32.totalorder 2, %s14
    // Predicated region
    $region61: #{grcu_forward.5} parent=5 // pred_check
      %p560 = pneg %p559
    $region62: #{grcu_forward.5} parent=5 // pred_check_branch
      %562 = sbr.rel (%p560) target = $region64
    $region63: #{grcu_forward.5} parent=5 // pred_region
      %s563 = ssub.s32 %s14, 2
      // Predicated region
      $region65: #{grcu_forward.5} parent=63 // pred_check
        %p564 = pneg %p226
      $region66: #{grcu_forward.5} parent=63 // pred_check_branch
        %566 = sbr.rel (%p564) target = $region68
      $region67: #{grcu_forward.5} parent=63 // pred_region
        %p567 = scmp.lt.s32.totalorder %s20, 2
        %s568 = scalar_select %p567, %s20, 2
        %s569 = smul.addr %s568, 4
        %s570 = scalar_lea.vmem %s8, %s569
      $region68: #{grcu_forward.5} parent=63 // pred_fallthru
        _
    $region64: #{grcu_forward.5} parent=5 // pred_fallthru
      _
  $region6: #{grcu_forward.5} parent=0 // loop_footer
    %s18 = sadd.s32 1, %s14
  $region7: #{grcu_forward.5} parent=0 // loop_footer_branch
    %13 = sbr.rel target = $region3
  $region8: #{grcu_forward.5} parent=0 // loop_exit
    _

</llo_original>
